<compile_context>
chip_gen: v6e
topology: v6e:2x2x1
jax: 0.10.0
libtpu: 0.0.40
codegen_flags: <defaults>
</compile_context>

<pallas_src>
import functools
import math

import jax
import jax.numpy as jnp
from jax.experimental import pallas as pl
from jax.experimental.pallas import tpu as pltpu


_SMOOTH = 1.0


def _sublane_multiple(dtype):
    itemsize = jnp.dtype(dtype).itemsize
    return 8 * max(1, 4 // itemsize)        # f32 -> 8, bf16 -> 16, int8 -> 32


def _dice_partial_kernel(pred_ref, target_ref, out_ref, inter_sc, denom_sc, *,
                         bpc, blk_elems, n_valid, need_mask, mask_start_g):
    """Accumulate per-batch partial sums for one split of the row-blocks.

    pred_ref/target_ref: (B, blk_r, 128) lane-dense blocks, or (B, tile_n)
    blocks (tile_n % 128 == 0) on the ragged fallback path.
    out_ref: (1, 2, B, 128) f32 -- [intersection, pred+target] partials for
    this split; the final dice/mean happens in the wrapper.
    """
    c = pl.program_id(0)     # split index ("parallel": one per TensorCore)
    k = pl.program_id(1)     # step within the split ("arbitrary")

    @pl.when(k == 0)
    def _():
        inter_sc[...] = jnp.zeros_like(inter_sc)
        denom_sc[...] = jnp.zeros_like(denom_sc)

    p = pred_ref[...].astype(jnp.float32)
    t = target_ref[...].astype(jnp.float32)

    def accumulate(pv, tv):
        if pv.ndim == 3:
            # Lane-dense (B, R, 128): reduce only over the sublane axis; the
            # single cross-lane reduce is deferred to the wrapper.
            inter_sc[...] += jnp.sum(pv * tv, axis=1)
            denom_sc[...] += jnp.sum(pv + tv, axis=1)
        else:
            # Ragged fallback (B, T): one vreg-wide cross-lane reduce per step
            # into lane 0 of the scratch (lanes 1..127 stay zero).
            inter_sc[:, 0:1] += jnp.sum(pv * tv, axis=1, keepdims=True)
            denom_sc[:, 0:1] += jnp.sum(pv + tv, axis=1, keepdims=True)

    if need_mask:
        g = c * bpc + k                      # global block index (unclamped)
        if mask_start_g > 0:
            @pl.when(g < mask_start_g)
            def _():
                accumulate(p, t)

        @pl.when(g >= mask_start_g)
        def _():
            # Flat per-batch element index of every loaded element; anything
            # >= n_valid is either OOB padding or extra target channels.
            if p.ndim == 3:
                pos = (jax.lax.broadcasted_iota(jnp.int32, p.shape, 1) * 128
                       + jax.lax.broadcasted_iota(jnp.int32, p.shape, 2))
            else:
                pos = jax.lax.broadcasted_iota(jnp.int32, p.shape, 1)
            valid = (g * blk_elems + pos) < n_valid
            zero = jnp.float32(0.0)
            accumulate(jnp.where(valid, p, zero), jnp.where(valid, t, zero))
    else:
        accumulate(p, t)

    @pl.when(k == bpc - 1)
    def _():
        out_ref[0, 0, :, :] = inter_sc[...]
        out_ref[0, 1, :, :] = denom_sc[...]


def _derive_block_and_vmem(block_bytes, vmem_limit_bytes):
    """Pick block size / VMEM limit from the chip's VMEM capacity."""
    mib = 1024 * 1024
    try:
        vmem_cap = int(pltpu.get_tpu_info().vmem_capacity_bytes)
    except Exception:  # query unavailable -> conservative defaults
        vmem_cap = 0
    if block_bytes is None:
        # v7x (64 MiB VMEM) -> ~10.7 MiB blocks; v5e/v6e (128 MiB) -> 12 MiB.
        block_bytes = min(12 * mib, vmem_cap // 6) if vmem_cap else 8 * mib
    if vmem_limit_bytes is None:
        if vmem_cap:
            # 2 inputs x 2 buffers x block, plus headroom, never above cap-8MiB.
            vmem_limit_bytes = min(vmem_cap - 8 * mib, 4 * block_bytes + 16 * mib)
        else:
            vmem_limit_bytes = 48 * mib
    return block_bytes, vmem_limit_bytes


def dice_loss_pallas(pred, target, *, block_bytes=None, vmem_limit_bytes=None):
    """Pallas implementation of DiceLoss.forward(pred, target).

    pred, target: (B, C, H, W) arrays (NCHW, as in PyTorch).  Any float/int
    dtype; inputs stream in their native dtype and accumulate in f32.
    Returns a scalar float32 loss.
    """
    B = pred.shape[0]
    assert target.shape[0] == B
    n_valid = math.prod(pred.shape[1:])          # valid elements per batch row

    if pred.shape[1] == 1:
        # PyTorch: target = target[:, 0:1].  Channel 0 is the first H*W
        # elements of each batch row (row-major), so we keep the full target
        # (no HBM copy) and never count columns >= n_valid.
        assert math.prod(target.shape[2:]) == math.prod(pred.shape[2:]), (
            "pred/target spatial sizes differ")
        tgt_cols = math.prod(target.shape[1:])
    else:
        tgt_cols = math.prod(target.shape[1:])
        assert tgt_cols == n_valid, "pred/target element counts differ"

    block_bytes, vmem_limit_bytes = _derive_block_and_vmem(
        block_bytes, vmem_limit_bytes)
    itemsize = max(jnp.dtype(pred.dtype).itemsize,
                   jnp.dtype(target.dtype).itemsize)
    sub = max(_sublane_multiple(pred.dtype), _sublane_multiple(target.dtype))

    use_3d = (n_valid % 128 == 0) and (n_valid // 128 >= sub)
    if use_3d:
        # Lane-dense layout: (B, N) -> (B, N//128, 128) is a free view.
        n_rows = n_valid // 128
        r_cap = max(sub, (block_bytes // (B * 128 * itemsize)) // sub * sub)
        blk_r = min(r_cap, (n_rows // sub) * sub)
        blk_elems = blk_r * 128
        pred_in = pred.reshape(B, n_rows, 128)
        target_in = target.reshape(B, tgt_cols // 128, 128)
        block_shape = (B, blk_r, 128)
    else:
        # Ragged-N fallback: (B, N) blocks, tile width a multiple of 128.
        b_pad = -(-B // sub) * sub               # sublane-padded batch rows
        tile_cap = max(128, (block_bytes // (b_pad * itemsize)) // 128 * 128)
        tile_n = min(tile_cap, -(-n_valid // 128) * 128)
        blk_elems = tile_n
        pred_in = pred.reshape(B, n_valid)
        target_in = target.reshape(B, tgt_cols)
        block_shape = (B, tile_n)

    n_blk = -(-n_valid // blk_elems)             # real blocks covering n_valid
    num_splits = 2 if n_blk >= 2 else 1          # v7x: one split per TensorCore
    bpc = -(-n_blk // num_splits)                # blocks per split
    need_mask = (num_splits * bpc * blk_elems) != n_valid
    mask_start_g = n_valid // blk_elems          # first block with invalid elems
    need_clamp = (num_splits * bpc) > n_blk      # phantom blocks exist

    if need_clamp:
        last_blk = n_blk - 1
        def _blk(c, k):
            return jnp.minimum(c * bpc + k, last_blk)
    else:
        def _blk(c, k):
            return c * bpc + k

    if use_3d:
        idx_map = lambda c, k: (0, _blk(c, k), 0)
    else:
        idx_map = lambda c, k: (0, _blk(c, k))

    kernel = functools.partial(
        _dice_partial_kernel, bpc=bpc, blk_elems=blk_elems, n_valid=n_valid,
        need_mask=need_mask, mask_start_g=mask_start_g)

    parts = pl.pallas_call(
        kernel,
        out_shape=jax.ShapeDtypeStruct((num_splits, 2, B, 128), jnp.float32),
        grid_spec=pltpu.PrefetchScalarGridSpec(
            num_scalar_prefetch=0,
            grid=(num_splits, bpc),
            in_specs=[pl.BlockSpec(block_shape, idx_map),
                      pl.BlockSpec(block_shape, idx_map)],
            out_specs=pl.BlockSpec((1, 2, B, 128), lambda c, k: (c, 0, 0, 0)),
            scratch_shapes=[pltpu.VMEM((B, 128), jnp.float32),
                            pltpu.VMEM((B, 128), jnp.float32)],
        ),
        compiler_params=pltpu.CompilerParams(
            dimension_semantics=("parallel", "arbitrary"),
            vmem_limit_bytes=vmem_limit_bytes,
        ),
    )(pred_in, target_in)

    # Tiny combine in plain JAX: sum over splits and lanes, then dice/mean.
    sums = jnp.sum(parts, axis=(0, 3))           # (2, B)
    dice = (2.0 * sums[0] + _SMOOTH) / (sums[1] + _SMOOTH)
    return (1.0 - jnp.sum(dice) / jnp.float32(B)).astype(jnp.float32)


def dice_loss_ref(pred, target):
    """Pure-JAX reference matching the PyTorch module exactly."""
    if pred.shape[1] == 1:
        target = target[:, 0:1, :, :]
    smooth = 1.0
    B = pred.shape[0]
    p = pred.reshape(B, -1).astype(jnp.float32)
    t = target.reshape(B, -1).astype(jnp.float32)
    inter = (p * t).sum(axis=1)
    dice = (2.0 * inter + smooth) / (p.sum(axis=1) + t.sum(axis=1) + smooth)
    return 1.0 - dice.sum() / B


if __name__ == "__main__":
    key = jax.random.PRNGKey(0)
    ks = jax.random.split(key, 8)

    def check(pred, target, tol=1e-5, **kw):
        got = jax.block_until_ready(dice_loss_pallas(pred, target, **kw))
        want = dice_loss_ref(pred, target)
        assert jnp.allclose(got, want, atol=tol, rtol=tol), (got, want)

    # 1) Multi-channel, lane-dense path, single block.
    p1 = jax.nn.sigmoid(jax.random.normal(ks[0], (2, 4, 16, 16), jnp.float32))
    t1 = (jax.random.uniform(ks[1], (2, 4, 16, 16)) > 0.5).astype(jnp.float32)
    check(p1, t1)

    # 2) Single-channel branch + ragged N (N=100): fallback path; target is
    #    read without any wrapper-side channel slice.
    p2 = jax.nn.sigmoid(jax.random.normal(ks[2], (2, 1, 10, 10), jnp.float32))
    t2 = (jax.random.uniform(ks[3], (2, 3, 10, 10)) > 0.5).astype(jnp.float32)
    check(p2, t2)

    # 3) Lane-dense path with two splits and a ragged last block (small
    #    block_bytes forces multiple row-blocks).
    p3 = jax.nn.sigmoid(jax.random.normal(ks[4], (2, 4, 63, 64), jnp.float32))
    t3 = (jax.random.uniform(ks[5], (2, 4, 63, 64)) > 0.5).astype(jnp.float32)
    check(p3, t3, block_bytes=64 * 1024)

    # 4) Single-channel branch, lane-dense path, phantom (clamped) block on
    #    split 1 plus channel-select-via-masking.
    p4 = jax.nn.sigmoid(jax.random.normal(ks[6], (2, 1, 48, 64), jnp.float32))
    t4 = (jax.random.uniform(ks[7], (2, 3, 48, 64)) > 0.5).astype(jnp.float32)
    check(p4, t4, block_bytes=8 * 1024)

    print("KERNEL_OK")
</pallas_src>

<mosaic_0001>
module attributes {stable_mosaic.version = 11 : i64} {
  func.func @_dice_partial_kernel(%arg0: i32, %arg1: i32, %arg2: memref<2x8x128xf32, #tpu.memory_space<vmem>>, %arg3: memref<2x8x128xf32, #tpu.memory_space<vmem>>, %arg4: memref<1x2x2x128xf32, #tpu.memory_space<vmem>>, %arg5: memref<2x128xf32, #tpu.memory_space<vmem>>, %arg6: memref<2x128xf32, #tpu.memory_space<vmem>>) attributes {dimension_semantics = [#tpu.dimension_semantics<parallel>, #tpu.dimension_semantics<arbitrary>], iteration_bounds = array<i64: 1, 1>, scalar_prefetch = 0 : i64, scratch_operands = 2 : i64, tpu.core_type = #tpu.core_type<tc>, window_params = [{transform_indices = @transform_0, window_bounds = array<i64: 2, 8, 128>}, {transform_indices = @transform_1, window_bounds = array<i64: 2, 8, 128>}, {transform_indices = @transform_2, window_bounds = array<i64: 1, 2, 2, 128>}]} {
    %c0_i32 = arith.constant 0 : i32
    %0 = arith.cmpi eq, %arg1, %c0_i32 : i32
    %1 = arith.extui %0 : i1 to i32
    %c0_i32_0 = arith.constant 0 : i32
    %2 = arith.cmpi ne, %1, %c0_i32_0 : i32
    scf.if %2 {
      %cst_17 = arith.constant 0.000000e+00 : f32
      %18 = vector.broadcast %cst_17 : f32 to vector<2x128xf32>
      %c0_18 = arith.constant 0 : index
      %c0_19 = arith.constant 0 : index
      %19 = vector.load %arg5[%c0_18, %c0_19] : memref<2x128xf32, #tpu.memory_space<vmem>>, vector<2x128xf32>
      tpu.vector_store %arg5[%c0_18, %c0_19], %18 {strides = array<i32>} : memref<2x128xf32, #tpu.memory_space<vmem>>, vector<2x128xf32>,
      %cst_20 = arith.constant 0.000000e+00 : f32
      %20 = vector.broadcast %cst_20 : f32 to vector<2x128xf32>
      %c0_21 = arith.constant 0 : index
      %c0_22 = arith.constant 0 : index
      %21 = vector.load %arg6[%c0_21, %c0_22] : memref<2x128xf32, #tpu.memory_space<vmem>>, vector<2x128xf32>
      tpu.vector_store %arg6[%c0_21, %c0_22], %20 {strides = array<i32>} : memref<2x128xf32, #tpu.memory_space<vmem>>, vector<2x128xf32>,
    } else {
    }
    %c0 = arith.constant 0 : index
    %c0_1 = arith.constant 0 : index
    %c0_2 = arith.constant 0 : index
    %3 = vector.load %arg2[%c0, %c0_1, %c0_2] : memref<2x8x128xf32, #tpu.memory_space<vmem>>, vector<2x8x128xf32>
    %c0_3 = arith.constant 0 : index
    %c0_4 = arith.constant 0 : index
    %c0_5 = arith.constant 0 : index
    %4 = vector.load %arg3[%c0_3, %c0_4, %c0_5] : memref<2x8x128xf32, #tpu.memory_space<vmem>>, vector<2x8x128xf32>
    %c0_6 = arith.constant 0 : index
    %c0_7 = arith.constant 0 : index
    %5 = vector.load %arg5[%c0_6, %c0_7] : memref<2x128xf32, #tpu.memory_space<vmem>>, vector<2x128xf32>
    %6 = arith.mulf %3, %4 : vector<2x8x128xf32>
    %cst = arith.constant dense<0.000000e+00> : vector<2x128xf32>
    %7 = vector.multi_reduction <add>, %6, %cst [1] : vector<2x8x128xf32> to vector<2x128xf32>
    %8 = arith.addf %5, %7 : vector<2x128xf32>
    %c0_8 = arith.constant 0 : index
    %c0_9 = arith.constant 0 : index
    %9 = vector.load %arg5[%c0_8, %c0_9] : memref<2x128xf32, #tpu.memory_space<vmem>>, vector<2x128xf32>
    tpu.vector_store %arg5[%c0_8, %c0_9], %8 {strides = array<i32>} : memref<2x128xf32, #tpu.memory_space<vmem>>, vector<2x128xf32>,
    %c0_10 = arith.constant 0 : index
    %c0_11 = arith.constant 0 : index
    %10 = vector.load %arg6[%c0_10, %c0_11] : memref<2x128xf32, #tpu.memory_space<vmem>>, vector<2x128xf32>
    %11 = arith.addf %3, %4 : vector<2x8x128xf32>
    %cst_12 = arith.constant dense<0.000000e+00> : vector<2x128xf32>
    %12 = vector.multi_reduction <add>, %11, %cst_12 [1] : vector<2x8x128xf32> to vector<2x128xf32>
    %13 = arith.addf %10, %12 : vector<2x128xf32>
    %c0_13 = arith.constant 0 : index
    %c0_14 = arith.constant 0 : index
    %14 = vector.load %arg6[%c0_13, %c0_14] : memref<2x128xf32, #tpu.memory_space<vmem>>, vector<2x128xf32>
    tpu.vector_store %arg6[%c0_13, %c0_14], %13 {strides = array<i32>} : memref<2x128xf32, #tpu.memory_space<vmem>>, vector<2x128xf32>,
    %c0_i32_15 = arith.constant 0 : i32
    %15 = arith.cmpi eq, %arg1, %c0_i32_15 : i32
    %16 = arith.extui %15 : i1 to i32
    %c0_i32_16 = arith.constant 0 : i32
    %17 = arith.cmpi ne, %16, %c0_i32_16 : i32
    scf.if %17 {
      %c0_17 = arith.constant 0 : index
      %c0_18 = arith.constant 0 : index
      %18 = vector.load %arg5[%c0_17, %c0_18] : memref<2x128xf32, #tpu.memory_space<vmem>>, vector<2x128xf32>
      %c0_19 = arith.constant 0 : index
      %c0_20 = arith.constant 0 : index
      %c0_21 = arith.constant 0 : index
      %c0_22 = arith.constant 0 : index
      %19 = vector.load %arg4[%c0_19, %c0_20, %c0_21, %c0_22] : memref<1x2x2x128xf32, #tpu.memory_space<vmem>>, vector<1x1x2x128xf32>
      %20 = vector.shape_cast %19 : vector<1x1x2x128xf32> to vector<2x128xf32>
      %21 = vector.shape_cast %18 : vector<2x128xf32> to vector<1x1x2x128xf32>
      tpu.vector_store %arg4[%c0_19, %c0_20, %c0_21, %c0_22], %21 {strides = array<i32>} : memref<1x2x2x128xf32, #tpu.memory_space<vmem>>, vector<1x1x2x128xf32>,
      %c0_23 = arith.constant 0 : index
      %c0_24 = arith.constant 0 : index
      %22 = vector.load %arg6[%c0_23, %c0_24] : memref<2x128xf32, #tpu.memory_space<vmem>>, vector<2x128xf32>
      %c0_25 = arith.constant 0 : index
      %c1 = arith.constant 1 : index
      %c0_26 = arith.constant 0 : index
      %c0_27 = arith.constant 0 : index
      %23 = vector.load %arg4[%c0_25, %c1, %c0_26, %c0_27] : memref<1x2x2x128xf32, #tpu.memory_space<vmem>>, vector<1x1x2x128xf32>
      %24 = vector.shape_cast %23 : vector<1x1x2x128xf32> to vector<2x128xf32>
      %25 = vector.shape_cast %22 : vector<2x128xf32> to vector<1x1x2x128xf32>
      tpu.vector_store %arg4[%c0_25, %c1, %c0_26, %c0_27], %25 {strides = array<i32>} : memref<1x2x2x128xf32, #tpu.memory_space<vmem>>, vector<1x1x2x128xf32>,
    } else {
    }
    return
  }
  func.func @transform_0(%arg0: i32, %arg1: i32) -> (i32, i32, i32) {
    %c1_i32 = arith.constant 1 : i32
    %0 = arith.muli %arg0, %c1_i32 : i32
    %1 = arith.addi %0, %arg1 : i32
    %c0_i32 = arith.constant 0 : i32
    %c0_i32_0 = arith.constant 0 : i32
    %c0_i32_1 = arith.constant 0 : i32
    return %c0_i32, %1, %c0_i32_0 : i32, i32, i32
  }
  func.func @transform_1(%arg0: i32, %arg1: i32) -> (i32, i32, i32) {
    %c1_i32 = arith.constant 1 : i32
    %0 = arith.muli %arg0, %c1_i32 : i32
    %1 = arith.addi %0, %arg1 : i32
    %c0_i32 = arith.constant 0 : i32
    %c0_i32_0 = arith.constant 0 : i32
    %c0_i32_1 = arith.constant 0 : i32
    return %c0_i32, %1, %c0_i32_0 : i32, i32, i32
  }
  func.func @transform_2(%arg0: i32, %arg1: i32) -> (i32, i32, i32, i32) {
    %c0_i32 = arith.constant 0 : i32
    %c0_i32_0 = arith.constant 0 : i32
    %c0_i32_1 = arith.constant 0 : i32
    %c0_i32_2 = arith.constant 0 : i32
    return %arg0, %c0_i32, %c0_i32_0, %c0_i32_1 : i32, i32, i32, i32
  }
}

</mosaic_0001>

<llo_original>
// kernel: tpu_custom_call.1
$region0: #{tpu_custom_call.1}
  #allocation0 [shape = 'u32[]', space=smem, size = 0x4, offset = 0x4, fixed_abs, tag = 'smem constant byte address 0x4 - core index']
  #allocation1 [shape = 'u32[144,128]{1,0:T(1,128)}', space=vmem, size = 0x12000, scoped, tag = 'internal scratch']
  #allocation2 [shape = 'f32[2,128]{1,0:T(2,128)}', space=vmem, size = 0x400, scoped, tag = 'scratch operand']
  #allocation3 [shape = 'f32[2,128]{1,0:T(2,128)}', space=vmem, size = 0x400, scoped, tag = 'scratch operand']
  %s0 = inlined_call_operand.hbm [shape: f32[2,8,128], index: 0, kind: input, shape index: {}]
  %s1 = inlined_call_operand.hbm [shape: f32[2,8,128], index: 1, kind: input, shape index: {}]
  %s2 = inlined_call_operand.hbm [shape: f32[1,2,2,128], index: 2, kind: output, shape index: {}]
  %s3 = sld [smem:[#allocation0]]
  $region34: #{tpu_custom_call.1} parent=0
    _
  %s5 = ssub.s32 1, %s3
  %s6 = scalar_select 0, %s5, %s3
  $region1: #{tpu_custom_call.1} parent=0
    #allocation4 [shape = 'u8[8192]{0}', space=vmem, size = 0x2000, scoped, tag = 'input window, operand 0, single buffered']
    #allocation5 [shape = 's32[1]{0}', space=sflag, size = 0x4, scoped, tag = 'scoped memory for tpu_custom_call.1']
    #allocation6 [shape = 's32[1]{0}', space=sflag, size = 0x4, scoped, tag = 'scoped memory for tpu_custom_call.1']
    #allocation7 [shape = 'u8[8192]{0}', space=vmem, size = 0x2000, scoped, tag = 'input window, operand 1, single buffered']
    #allocation8 [shape = 's32[1]{0}', space=sflag, size = 0x4, scoped, tag = 'scoped memory for tpu_custom_call.1']
    #allocation9 [shape = 'u8[2048]{0}', space=vmem, size = 0x800, scoped, tag = 'output window, operand 0, single buffered']
    %7 = vsyncpa [#allocation5], 0
    %8 = vsyncpa [#allocation8], 0
    %9 = vsyncpa [#allocation6], 0
    // Predicated region
    $region2: #{tpu_custom_call.1} parent=1 // pred_check
      _
    $region3: #{tpu_custom_call.1} parent=1 // pred_check_branch
      %11 = sbr.rel (0) target = $region5
    $region4: #{tpu_custom_call.1} parent=1 // pred_region
      %s12 = sadd.s32 0, 0
      %s14 = ssub.s32 256, 256
      %15 = vsyncadd [#allocation5], %s14
      %s16 = smul.addr %s12, 128
      %s17 = scalar_lea.hbm %s0, %s16
      %s18 = sshll.u32 [#allocation4], 4
      %s19 = int_to_ptr.vmem [resolvable:$true] %s18
      %24 = dma.hbm_to_vmem [thread:$0]  %s17, 256, %s19, [#allocation5], 128, 128, 8
    $region5: #{tpu_custom_call.1} parent=1 // pred_fallthru
      _
    // Predicated region
    $region6: #{tpu_custom_call.1} parent=1 // pred_check
      _
    $region7: #{tpu_custom_call.1} parent=1 // pred_check_branch
      %26 = sbr.rel (0) target = $region9
    $region8: #{tpu_custom_call.1} parent=1 // pred_region
      %s27 = sadd.s32 0, 0
      %s29 = ssub.s32 256, 256
      %30 = vsyncadd [#allocation8], %s29
      %s31 = smul.addr %s27, 128
      %s32 = scalar_lea.hbm %s1, %s31
      %s33 = sshll.u32 [#allocation7], 4
      %s34 = int_to_ptr.vmem [resolvable:$true] %s33
      %39 = dma.hbm_to_vmem [thread:$0]  %s32, 256, %s34, [#allocation8], 128, 128, 8
    $region9: #{tpu_custom_call.1} parent=1 // pred_fallthru
      _
    // Predicated region
    $region10: #{tpu_custom_call.1} parent=1 // pred_check
      _
    $region11: #{tpu_custom_call.1} parent=1 // pred_check_branch
      %41 = sbr.rel (0) target = $region13
    $region12: #{tpu_custom_call.1} parent=1 // pred_region
      %42 = dma.done [#allocation5], 256
    $region13: #{tpu_custom_call.1} parent=1 // pred_fallthru
      _
    // Predicated region
    $region14: #{tpu_custom_call.1} parent=1 // pred_check
      _
    $region15: #{tpu_custom_call.1} parent=1 // pred_check_branch
      %44 = sbr.rel (0) target = $region17
    $region16: #{tpu_custom_call.1} parent=1 // pred_region
      %45 = dma.done [#allocation8], 256
    $region17: #{tpu_custom_call.1} parent=1 // pred_fallthru
      _
    %s46 = sadd.s32 0, 0
    %s47 = sadd.s32 0, 0
    %p48 = scmp.eq.s32.totalorder 0, 0
    // Predicated region
    $region18: #{tpu_custom_call.1} parent=1 // pred_check
      %p49 = pneg %p48
    $region19: #{tpu_custom_call.1} parent=1 // pred_check_branch
      %51 = sbr.rel (%p49) target = $region21
    $region20: #{tpu_custom_call.1} parent=1 // pred_region
      %52 = vst [vmem:[#allocation2] sm:$0x3] 0.0
      %53 = vst [vmem:[#allocation3] sm:$0x3] 0.0
    $region21: #{tpu_custom_call.1} parent=1 // pred_fallthru
      _
    %v54 = vld [vmem:[#allocation4] sm:$0xff]
    %v55 = vld [vmem:[#allocation4 + $0x8] sm:$0xff]
    %v56 = vld [vmem:[#allocation7] sm:$0xff]
    %v57 = vld [vmem:[#allocation7 + $0x8] sm:$0xff]
    %v58 = vld [vmem:[#allocation2] sm:$0x3]
    %v59 = vmul.f32 %v54, %v56
    %v60 = vmul.f32 %v55, %v57
    %v61 = vrot.slane %v59, 4
    %v62 = vadd.f32 %v59, %v61
    %v63 = vrot.slane %v62, 2
    %v64 = vadd.f32 %v62, %v63
    %v65 = vrot.slane %v64, 1
    %v66 = vadd.f32 %v64, %v65
    %v67 = vrot.slane %v60, 4
    %v68 = vadd.f32 %v60, %v67
    %v69 = vrot.slane %v68, 2
    %v70 = vadd.f32 %v68, %v69
    %v71 = vrot.slane %v70, 1
    %v72 = vadd.f32 %v70, %v71
    %vm75 = vcmask 1041409
    %v76 = vsel %vm75, %v72, %v66
    %v78 = vadd.f32 %v58, %v76
    %79 = vst [vmem:[#allocation2] sm:$0x3] %v78
    %v80 = vld [vmem:[#allocation3] sm:$0x3]
    %v81 = vadd.f32 %v54, %v56
    %v82 = vadd.f32 %v55, %v57
    %v83 = vrot.slane %v81, 4
    %v84 = vadd.f32 %v81, %v83
    %v85 = vrot.slane %v84, 2
    %v86 = vadd.f32 %v84, %v85
    %v87 = vrot.slane %v86, 1
    %v88 = vadd.f32 %v86, %v87
    %v89 = vrot.slane %v82, 4
    %v90 = vadd.f32 %v82, %v89
    %v91 = vrot.slane %v90, 2
    %v92 = vadd.f32 %v90, %v91
    %v93 = vrot.slane %v92, 1
    %v94 = vadd.f32 %v92, %v93
    %v97 = vsel %vm75, %v94, %v88
    %v99 = vadd.f32 %v80, %v97
    %100 = vst [vmem:[#allocation3] sm:$0x3] %v99
    // Predicated region
    $region22: #{tpu_custom_call.1} parent=1 // pred_check
      %p101 = pneg %p48
    $region23: #{tpu_custom_call.1} parent=1 // pred_check_branch
      %103 = sbr.rel (%p101) target = $region25
    $region24: #{tpu_custom_call.1} parent=1 // pred_region
      %v104 = vld [vmem:[#allocation2] sm:$0x3]
      %105 = vst [vmem:[#allocation9] sm:$0x3] %v104
      %v106 = vld [vmem:[#allocation3] sm:$0x3]
      %s107 = scalar_lea.vmem [#allocation9], 2
      %108 = vst [vmem:[%s107] sm:$0x3] %v106
    $region25: #{tpu_custom_call.1} parent=1 // pred_fallthru
      _
    // Predicated region
    $region26: #{tpu_custom_call.1} parent=1 // pred_check
      _
    $region27: #{tpu_custom_call.1} parent=1 // pred_check_branch
      %110 = sbr.rel (0) target = $region29
    $region28: #{tpu_custom_call.1} parent=1 // pred_region
      %s112 = ssub.s32 64, 64
      %113 = vsyncadd [#allocation6], %s112
      %s114 = sshll.u32 [#allocation9], 4
      %s115 = int_to_ptr.vmem [resolvable:$true] %s114
      %120 = dma.vmem_to_hbm [thread:$0]  %s115, 64, %s2, [#allocation6], 32, 32, 2
    $region29: #{tpu_custom_call.1} parent=1 // pred_fallthru
      _
    // Predicated region
    $region30: #{tpu_custom_call.1} parent=1 // pred_check
      _
    $region31: #{tpu_custom_call.1} parent=1 // pred_check_branch
      %122 = sbr.rel (0) target = $region33
    $region32: #{tpu_custom_call.1} parent=1 // pred_region
      %123 = dma.done [#allocation6], 64
    $region33: #{tpu_custom_call.1} parent=1 // pred_fallthru
      _
    %124 = vsyncpa [#allocation5], 1
    %125 = vsyncpa [#allocation8], 1
    %126 = vsyncpa [#allocation6], 1

</llo_original>
